<compile_context>
chip_gen: v6e
topology: v6e:2x2x1
jax: 0.10.0
libtpu: 0.0.40
codegen_flags: <defaults>
</compile_context>

<pallas_src>
import jax
import jax.numpy as jnp
from jax.experimental import pallas as pl
from jax.experimental.pallas import tpu as pltpu

LANE = 128


# ---------------------------------------------------------------------------
# Parameter init + one-time fusion (review item 1)
# ---------------------------------------------------------------------------
def xavier_uniform(key, shape, dtype=jnp.float32):
    fan_in, fan_out = shape
    limit = (6.0 / (fan_in + fan_out)) ** 0.5
    return jax.random.uniform(key, shape, dtype, minval=-limit, maxval=limit)


def init_params(key, input_size, hidden_size, dtype=jnp.float32):
    ks = jax.random.split(key, 6)
    return {
        "weight_ir": xavier_uniform(ks[0], (input_size, hidden_size), dtype),
        "weight_hr": xavier_uniform(ks[1], (hidden_size, hidden_size), dtype),
        "bias_r": jnp.full((hidden_size,), 0.01, dtype),
        "weight_iz": xavier_uniform(ks[2], (input_size, hidden_size), dtype),
        "weight_hz": xavier_uniform(ks[3], (hidden_size, hidden_size), dtype),
        "bias_z": jnp.full((hidden_size,), 0.01, dtype),
        "weight_in": xavier_uniform(ks[4], (input_size, hidden_size), dtype),
        "bias_in": jnp.full((hidden_size,), 0.01, dtype),
        "weight_hn": xavier_uniform(ks[5], (hidden_size, hidden_size), dtype),
        # bias_hn exists in the module but is unused in forward (kept for parity).
        "bias_hn": jnp.full((hidden_size,), 0.01, dtype),
    }


def fuse_params(p, weight_dtype=jnp.float32):
    """Fuse + lane-pad gate weights ONCE (not per forward call).

    Layout (Hp = round_up(H, 128); each gate occupies its own 128-lane stripe):
      w_i  : [I,  3*Hp]   columns = [r | z | n] stripes       (input path)
      w_h  : [Hp, 2*Hp]   columns = [r | z] stripes           (hidden path, r/z)
      w_hn : [Hp, Hp]                                          (hidden path, n)
      b    : [1,  3*Hp]   = [b_r | b_z | b_in] stripes
    Padded rows/cols/lanes are zero, so padded lanes of h stay zero.
    """
    H = p["weight_hn"].shape[0]
    I = p["weight_ir"].shape[0]
    Hp = -(-H // LANE) * LANE

    def pad_cols(w):   # [K, H] -> [K, Hp]
        return jnp.pad(w, ((0, 0), (0, Hp - H)))

    def pad_rc(w):     # [H, H] -> [Hp, Hp]
        return jnp.pad(w, ((0, Hp - H), (0, Hp - H)))

    def pad_b(b):      # [H] -> [Hp]
        return jnp.pad(b, (0, Hp - H))

    w_i = jnp.concatenate(
        [pad_cols(p["weight_ir"]), pad_cols(p["weight_iz"]), pad_cols(p["weight_in"])],
        axis=1,
    ).astype(weight_dtype)                                             # [I, 3Hp]
    w_h = jnp.concatenate(
        [pad_rc(p["weight_hr"]), pad_rc(p["weight_hz"])], axis=1
    ).astype(weight_dtype)                                             # [Hp, 2Hp]
    w_hn = pad_rc(p["weight_hn"]).astype(weight_dtype)                 # [Hp, Hp]
    b = jnp.concatenate(
        [pad_b(p["bias_r"]), pad_b(p["bias_z"]), pad_b(p["bias_in"])]
    ).reshape(1, 3 * Hp).astype(jnp.float32)                           # [1, 3Hp]

    return {"w_i": w_i, "w_h": w_h, "w_hn": w_hn, "b": b, "H": H, "Hp": Hp, "I": I}


# ---------------------------------------------------------------------------
# Single-step cell kernel (exact module forward)
# ---------------------------------------------------------------------------
def relu_gru_cell_kernel(x_ref, h_ref, w_i_ref, w_h_ref, w_hn_ref, b_ref, out_ref):
    Hp = h_ref.shape[1]
    H = out_ref.shape[1]

    x = x_ref[...]            # [B, I]
    h = h_ref[...]            # [B, Hp]  (lanes H..Hp are zero)

    # One fused input-path matmul + fused bias add: [B, 3Hp]
    xg = jnp.dot(x, w_i_ref[...], preferred_element_type=jnp.float32) + b_ref[...]
    # One fused hidden-path matmul for the r,z gates: [B, 2Hp]
    hg = jnp.dot(h, w_h_ref[...], preferred_element_type=jnp.float32)

    # Single sigmoid over the fused [B, 2Hp] slab; all slices are 128-lane aligned.
    rz = jax.nn.sigmoid(xg[:, : 2 * Hp] + hg)
    r = rz[:, :Hp]
    z = rz[:, Hp:]

    # Candidate gate: relu, r applied to h BEFORE the matmul, bias_hn unused
    # (matches the physiopro ReluGRUCell forward exactly).
    n = jnp.maximum(
        xg[:, 2 * Hp :]
        + jnp.dot(h * r, w_hn_ref[...], preferred_element_type=jnp.float32),
        0.0,
    )

    # (1-z)*n + z*h  ==  n + z*(h - n)   (one fewer VPU op)
    h_new = n + z * (h - n)
    out_ref[...] = h_new[:, :H].astype(out_ref.dtype)


def relu_gru_cell(x, h, fused):
    """x: [B, I], h: [B, H] -> [B, H].  `fused` from fuse_params() (built once)."""
    B = x.shape[0]
    H, Hp = fused["H"], fused["Hp"]
    h_pad = jnp.pad(h, ((0, 0), (0, Hp - H)))   # tiny activation pad (weights fused at init)

    vmem = pl.BlockSpec(memory_space=pltpu.MemorySpace.VMEM)
    # No grid: everything resident in VMEM (shapes are tiny) — no grid-loop or
    # double-buffer setup overhead for the single-step cell.
    return pl.pallas_call(
        relu_gru_cell_kernel,
        out_shape=jax.ShapeDtypeStruct((B, H), x.dtype),
        in_specs=[vmem] * 6,
        out_specs=vmem,
    )(x, h_pad, fused["w_i"], fused["w_h"], fused["w_hn"], fused["b"])


# ---------------------------------------------------------------------------
# Fused T-step recurrence (review item 2): one pallas_call, grid over T,
# weights VMEM-resident, h carried in VMEM scratch, x-path matmul batched.
# ---------------------------------------------------------------------------
def relu_gru_seq_kernel(xg_ref, h0_ref, w_h_ref, w_hn_ref, out_ref, h_scratch):
    t = pl.program_id(0)
    Hp = h_scratch.shape[1]
    H = out_ref.shape[1]

    @pl.when(t == 0)
    def _():
        h_scratch[...] = h0_ref[...]

    h = h_scratch[...]        # [B, Hp]
    xg = xg_ref[...]          # [B, 3Hp] = precomputed x-path + bias for step t

    hg = jnp.dot(h, w_h_ref[...], preferred_element_type=jnp.float32)   # [B, 2Hp]
    rz = jax.nn.sigmoid(xg[:, : 2 * Hp] + hg)
    r = rz[:, :Hp]
    z = rz[:, Hp:]
    n = jnp.maximum(
        xg[:, 2 * Hp :]
        + jnp.dot(h * r, w_hn_ref[...], preferred_element_type=jnp.float32),
        0.0,
    )
    h_new = n + z * (h - n)

    h_scratch[...] = h_new                     # carried state stays in VMEM
    out_ref[...] = h_new[:, :H].astype(out_ref.dtype)


def relu_gru_sequence(xs, h0, fused):
    """xs: [T, B, I], h0: [B, H] -> all hidden states [T, B, H]."""
    T, B, I = xs.shape
    H, Hp = fused["H"], fused["Hp"]

    # Batched x-path pre-pass: one MXU-efficient [T*B, I] x [I, 3Hp] matmul
    # (+ bias, hoisted out of the per-step loop).
    xg = (
        jnp.dot(xs.reshape(T * B, I), fused["w_i"], preferred_element_type=jnp.float32)
        + fused["b"]
    ).reshape(T, B, 3 * Hp)
    h0_pad = jnp.pad(h0, ((0, 0), (0, Hp - H))).astype(jnp.float32)

    grid_spec = pltpu.PrefetchScalarGridSpec(
        num_scalar_prefetch=0,
        grid=(T,),
        in_specs=[
            pl.BlockSpec((None, B, 3 * Hp), lambda t: (t, 0, 0)),  # per-step xg
            pl.BlockSpec((B, Hp), lambda t: (0, 0)),               # h0   (resident)
            pl.BlockSpec((Hp, 2 * Hp), lambda t: (0, 0)),          # w_h  (resident)
            pl.BlockSpec((Hp, Hp), lambda t: (0, 0)),              # w_hn (resident)
        ],
        out_specs=pl.BlockSpec((None, B, H), lambda t: (t, 0, 0)),
        scratch_shapes=[pltpu.VMEM((B, Hp), jnp.float32)],         # carried h
    )
    return pl.pallas_call(
        relu_gru_seq_kernel,
        out_shape=jax.ShapeDtypeStruct((T, B, H), h0.dtype),
        grid_spec=grid_spec,
        compiler_params=pltpu.CompilerParams(dimension_semantics=("arbitrary",)),
    )(xg, h0_pad, fused["w_h"], fused["w_hn"])


# ---------------------------------------------------------------------------
# Pure-JAX references (mirror the PyTorch forward exactly)
# ---------------------------------------------------------------------------
def relu_gru_cell_ref(x, h, p):
    r = jax.nn.sigmoid(x @ p["weight_ir"] + h @ p["weight_hr"] + p["bias_r"])
    z = jax.nn.sigmoid(x @ p["weight_iz"] + h @ p["weight_hz"] + p["bias_z"])
    n = jax.nn.relu(x @ p["weight_in"] + (h * r) @ p["weight_hn"] + p["bias_in"])
    return (1.0 - z) * n + z * h


def relu_gru_sequence_ref(xs, h0, p):
    def step(h, x):
        h_new = relu_gru_cell_ref(x, h, p)
        return h_new, h_new

    _, ys = jax.lax.scan(step, h0, xs)
    return ys


# ---------------------------------------------------------------------------
if __name__ == "__main__":
    B, INPUT_SIZE, HIDDEN_SIZE, T = 8, 16, 32, 12

    key = jax.random.PRNGKey(0)
    k_params, k_x, k_h, k_xs = jax.random.split(key, 4)

    params = init_params(k_params, INPUT_SIZE, HIDDEN_SIZE)
    fused = fuse_params(params)   # done ONCE (not per forward call)

    x = jax.random.normal(k_x, (B, INPUT_SIZE), jnp.float32)
    h = jax.random.normal(k_h, (B, HIDDEN_SIZE), jnp.float32)
    xs = jax.random.normal(k_xs, (T, B, INPUT_SIZE), jnp.float32)

    # --- single-step cell (the module forward) ---
    out = jax.block_until_ready(relu_gru_cell(x, h, fused))
    ref = relu_gru_cell_ref(x, h, params)
    assert out.shape == (B, HIDDEN_SIZE)
    assert jnp.allclose(out, ref, atol=1e-5, rtol=1e-5), "single-step mismatch vs reference"

    # --- fused T-step recurrence (the real LSTNet-style workload) ---
    hs = jax.block_until_ready(relu_gru_sequence(xs, h, fused))
    hs_ref = relu_gru_sequence_ref(xs, h, params)
    assert hs.shape == (T, B, HIDDEN_SIZE)
    assert jnp.allclose(hs, hs_ref, atol=1e-4, rtol=1e-4), "sequence mismatch vs reference"

    print("KERNEL_OK")
</pallas_src>

<mosaic_0001>
module attributes {stable_mosaic.version = 11 : i64} {
  func.func @relu_gru_cell_kernel(%arg0: memref<8x16xf32, #tpu.memory_space<vmem>>, %arg1: memref<8x128xf32, #tpu.memory_space<vmem>>, %arg2: memref<16x384xf32, #tpu.memory_space<vmem>>, %arg3: memref<128x256xf32, #tpu.memory_space<vmem>>, %arg4: memref<128x128xf32, #tpu.memory_space<vmem>>, %arg5: memref<1x384xf32, #tpu.memory_space<vmem>>, %arg6: memref<8x32xf32, #tpu.memory_space<vmem>>) attributes {dimension_semantics = [], scalar_prefetch = 0 : i64, scratch_operands = 0 : i64, tpu.core_type = #tpu.core_type<tc>} {
    %c0 = arith.constant 0 : index
    %c0_0 = arith.constant 0 : index
    %0 = vector.load %arg0[%c0, %c0_0] : memref<8x16xf32, #tpu.memory_space<vmem>>, vector<8x16xf32>
    %c0_1 = arith.constant 0 : index
    %c0_2 = arith.constant 0 : index
    %1 = vector.load %arg1[%c0_1, %c0_2] : memref<8x128xf32, #tpu.memory_space<vmem>>, vector<8x128xf32>
    %c0_3 = arith.constant 0 : index
    %c0_4 = arith.constant 0 : index
    %2 = vector.load %arg2[%c0_3, %c0_4] : memref<16x384xf32, #tpu.memory_space<vmem>>, vector<16x384xf32>
    %cst = arith.constant dense<0.000000e+00> : vector<8x384xf32>
    %3 = tpu.matmul %0, %2, %cst {dimension_numbers = #tpu.dot_dimension_numbers<[1], [0], [0], [1], [0, 0, 1, 1], [], []>} : vector<8x16xf32>, vector<16x384xf32>, vector<8x384xf32> -> vector<8x384xf32>
    %c0_5 = arith.constant 0 : index
    %c0_6 = arith.constant 0 : index
    %4 = vector.load %arg5[%c0_5, %c0_6] : memref<1x384xf32, #tpu.memory_space<vmem>>, vector<1x384xf32>
    %5 = vector.broadcast %4 : vector<1x384xf32> to vector<8x384xf32>
    %6 = arith.addf %3, %5 : vector<8x384xf32>
    %c0_7 = arith.constant 0 : index
    %c0_8 = arith.constant 0 : index
    %7 = vector.load %arg3[%c0_7, %c0_8] : memref<128x256xf32, #tpu.memory_space<vmem>>, vector<128x256xf32>
    %cst_9 = arith.constant dense<0.000000e+00> : vector<8x256xf32>
    %8 = tpu.matmul %1, %7, %cst_9 {dimension_numbers = #tpu.dot_dimension_numbers<[1], [0], [0], [1], [0, 0, 1, 1], [], []>} : vector<8x128xf32>, vector<128x256xf32>, vector<8x256xf32> -> vector<8x256xf32>
    %9 = vector.extract_strided_slice %6 {offsets = [0, 0], sizes = [8, 256], strides = [1, 1]} : vector<8x384xf32> to vector<8x256xf32>
    %10 = arith.addf %9, %8 : vector<8x256xf32>
    %11 = arith.negf %10 : vector<8x256xf32>
    %12 = math.exp %11 : vector<8x256xf32>
    %cst_10 = arith.constant 1.000000e+00 : f32
    %13 = vector.broadcast %cst_10 : f32 to vector<8x256xf32>
    %14 = arith.addf %13, %12 : vector<8x256xf32>
    %15 = arith.divf %13, %14 : vector<8x256xf32>
    %16 = vector.extract_strided_slice %15 {offsets = [0, 0], sizes = [8, 128], strides = [1, 1]} : vector<8x256xf32> to vector<8x128xf32>
    %17 = vector.extract_strided_slice %15 {offsets = [0, 128], sizes = [8, 128], strides = [1, 1]} : vector<8x256xf32> to vector<8x128xf32>
    %18 = vector.extract_strided_slice %6 {offsets = [0, 256], sizes = [8, 128], strides = [1, 1]} : vector<8x384xf32> to vector<8x128xf32>
    %19 = arith.mulf %1, %16 : vector<8x128xf32>
    %c0_11 = arith.constant 0 : index
    %c0_12 = arith.constant 0 : index
    %20 = vector.load %arg4[%c0_11, %c0_12] : memref<128x128xf32, #tpu.memory_space<vmem>>, vector<128x128xf32>
    %cst_13 = arith.constant dense<0.000000e+00> : vector<8x128xf32>
    %21 = tpu.matmul %19, %20, %cst_13 {dimension_numbers = #tpu.dot_dimension_numbers<[1], [0], [0], [1], [0, 0, 1, 1], [], []>} : vector<8x128xf32>, vector<128x128xf32>, vector<8x128xf32> -> vector<8x128xf32>
    %22 = arith.addf %18, %21 : vector<8x128xf32>
    %cst_14 = arith.constant 0.000000e+00 : f32
    %23 = vector.broadcast %cst_14 : f32 to vector<8x128xf32>
    %24 = arith.maximumf %22, %23 : vector<8x128xf32>
    %25 = arith.subf %1, %24 : vector<8x128xf32>
    %26 = arith.mulf %17, %25 : vector<8x128xf32>
    %27 = arith.addf %24, %26 : vector<8x128xf32>
    %28 = vector.extract_strided_slice %27 {offsets = [0, 0], sizes = [8, 32], strides = [1, 1]} : vector<8x128xf32> to vector<8x32xf32>
    %c0_15 = arith.constant 0 : index
    %c0_16 = arith.constant 0 : index
    %29 = vector.load %arg6[%c0_15, %c0_16] : memref<8x32xf32, #tpu.memory_space<vmem>>, vector<8x32xf32>
    tpu.vector_store %arg6[%c0_15, %c0_16], %28 {strides = array<i32>} : memref<8x32xf32, #tpu.memory_space<vmem>>, vector<8x32xf32>,
    return
  }
}

</mosaic_0001>

<llo_original>
// kernel: tpu_custom_call.1
$region0: #{tpu_custom_call.1}
  #allocation0 [shape = 'u32[]', space=smem, size = 0x4, offset = 0x4, fixed_abs, tag = 'smem constant byte address 0x4 - core index']
  #allocation1 [shape = 'u32[144,128]{1,0:T(1,128)}', space=vmem, size = 0x12000, scoped, tag = 'internal scratch']
  %s0 = inlined_call_operand.hbm [shape: f32[8,16], index: 0, kind: input, shape index: {}]
  %s1 = inlined_call_operand.hbm [shape: f32[8,128], index: 1, kind: input, shape index: {}]
  %s2 = inlined_call_operand.hbm [shape: f32[16,384], index: 2, kind: input, shape index: {}]
  %s3 = inlined_call_operand.hbm [shape: f32[128,256], index: 3, kind: input, shape index: {}]
  %s4 = inlined_call_operand.hbm [shape: f32[128,128], index: 4, kind: input, shape index: {}]
  %s5 = inlined_call_operand.vmem [shape: f32[1,384], index: 5, kind: input, shape index: {}]
  %s6 = inlined_call_operand.hbm [shape: f32[8,32], index: 6, kind: output, shape index: {}]
  %s7 = sld [smem:[#allocation0]]
  $region54: #{tpu_custom_call.1} parent=0
    _
  %s9 = ssub.s32 1, %s7
  %s10 = scalar_select 0, %s9, %s7
  $region1: #{tpu_custom_call.1} parent=0
    #allocation2 [shape = 'u8[4096]{0}', space=vmem, size = 0x1000, scoped, tag = 'input window, operand 0, single buffered']
    #allocation3 [shape = 's32[1]{0}', space=sflag, size = 0x4, scoped, tag = 'scoped memory for tpu_custom_call.1']
    #allocation4 [shape = 's32[1]{0}', space=sflag, size = 0x4, scoped, tag = 'scoped memory for tpu_custom_call.1']
    #allocation5 [shape = 'u8[4096]{0}', space=vmem, size = 0x1000, scoped, tag = 'input window, operand 1, single buffered']
    #allocation6 [shape = 's32[1]{0}', space=sflag, size = 0x4, scoped, tag = 'scoped memory for tpu_custom_call.1']
    #allocation7 [shape = 'u8[24576]{0}', space=vmem, size = 0x6000, scoped, tag = 'input window, operand 2, single buffered']
    #allocation8 [shape = 'u8[131072]{0}', space=vmem, size = 0x20000, scoped, tag = 'input window, operand 3, single buffered']
    #allocation9 [shape = 's32[1]{0}', space=sflag, size = 0x4, scoped, tag = 'scoped memory for tpu_custom_call.1']
    #allocation10 [shape = 'u8[65536]{0}', space=vmem, size = 0x10000, scoped, tag = 'input window, operand 4, single buffered']
    #allocation11 [shape = 'u8[4096]{0}', space=vmem, size = 0x1000, scoped, tag = 'output window, operand 0, single buffered']
    %11 = vsyncpa [#allocation3], 0
    %12 = vsyncpa [#allocation6], 0
    %13 = vsyncpa [#allocation9], 0
    %14 = vsyncpa [#allocation4], 0
    // Predicated region
    $region2: #{tpu_custom_call.1} parent=1 // pred_check
      _
    $region3: #{tpu_custom_call.1} parent=1 // pred_check_branch
      %16 = sbr.rel (0) target = $region5
    $region4: #{tpu_custom_call.1} parent=1 // pred_region
      %s18 = ssub.s32 128, 128
      %19 = vsyncadd [#allocation3], %s18
      %s21 = sshll.u32 [#allocation2], 4
      %s22 = int_to_ptr.vmem [resolvable:$true] %s21
      %24 = dma.hbm_to_vmem [thread:$0]  %s0, 128, %s22, [#allocation3]
    $region5: #{tpu_custom_call.1} parent=1 // pred_fallthru
      _
    // Predicated region
    $region6: #{tpu_custom_call.1} parent=1 // pred_check
      _
    $region7: #{tpu_custom_call.1} parent=1 // pred_check_branch
      %26 = sbr.rel (0) target = $region9
    $region8: #{tpu_custom_call.1} parent=1 // pred_region
      %s28 = ssub.s32 128, 128
      %29 = vsyncadd [#allocation6], %s28
      %s31 = sshll.u32 [#allocation5], 4
      %s32 = int_to_ptr.vmem [resolvable:$true] %s31
      %34 = dma.hbm_to_vmem [thread:$0]  %s1, 128, %s32, [#allocation6]
    $region9: #{tpu_custom_call.1} parent=1 // pred_fallthru
      _
    // Predicated region
    $region10: #{tpu_custom_call.1} parent=1 // pred_check
      _
    $region11: #{tpu_custom_call.1} parent=1 // pred_check_branch
      %36 = sbr.rel (0) target = $region13
    $region12: #{tpu_custom_call.1} parent=1 // pred_region
      %s38 = ssub.s32 768, 768
      %39 = vsyncadd [#allocation6], %s38
      %s40 = sshll.u32 [#allocation7], 4
      %s41 = int_to_ptr.vmem [resolvable:$true] %s40
      %46 = dma.hbm_to_vmem [thread:$0]  %s2, 768, %s41, [#allocation6], 384, 384, 24
    $region13: #{tpu_custom_call.1} parent=1 // pred_fallthru
      _
    // Predicated region
    $region14: #{tpu_custom_call.1} parent=1 // pred_check
      _
    $region15: #{tpu_custom_call.1} parent=1 // pred_check_branch
      %48 = sbr.rel (0) target = $region17
    $region16: #{tpu_custom_call.1} parent=1 // pred_region
      %s50 = ssub.s32 4096, 4096
      %51 = vsyncadd [#allocation9], %s50
      %s52 = sshll.u32 [#allocation8], 4
      %s53 = int_to_ptr.vmem [resolvable:$true] %s52
      %58 = dma.hbm_to_vmem [thread:$0]  %s3, 4096, %s53, [#allocation9], 256, 256, 16
    $region17: #{tpu_custom_call.1} parent=1 // pred_fallthru
      _
    // Predicated region
    $region18: #{tpu_custom_call.1} parent=1 // pred_check
      _
    $region19: #{tpu_custom_call.1} parent=1 // pred_check_branch
      %60 = sbr.rel (0) target = $region21
    $region20: #{tpu_custom_call.1} parent=1 // pred_region
      %s62 = ssub.s32 2048, 2048
      %63 = vsyncadd [#allocation9], %s62
      %s64 = sshll.u32 [#allocation10], 4
      %s65 = int_to_ptr.vmem [resolvable:$true] %s64
      %70 = dma.hbm_to_vmem [thread:$0]  %s4, 2048, %s65, [#allocation9], 128, 128, 8
    $region21: #{tpu_custom_call.1} parent=1 // pred_fallthru
      _
    // Predicated region
    $region22: #{tpu_custom_call.1} parent=1 // pred_check
      _
    $region23: #{tpu_custom_call.1} parent=1 // pred_check_branch
      %72 = sbr.rel (0) target = $region25
    $region24: #{tpu_custom_call.1} parent=1 // pred_region
      _
    $region25: #{tpu_custom_call.1} parent=1 // pred_fallthru
      _
    // Predicated region
    $region26: #{tpu_custom_call.1} parent=1 // pred_check
      _
    $region27: #{tpu_custom_call.1} parent=1 // pred_check_branch
      %74 = sbr.rel (0) target = $region29
    $region28: #{tpu_custom_call.1} parent=1 // pred_region
      %75 = dma.done [#allocation3], 128
    $region29: #{tpu_custom_call.1} parent=1 // pred_fallthru
      _
    // Predicated region
    $region30: #{tpu_custom_call.1} parent=1 // pred_check
      _
    $region31: #{tpu_custom_call.1} parent=1 // pred_check_branch
      %77 = sbr.rel (0) target = $region33
    $region32: #{tpu_custom_call.1} parent=1 // pred_region
      %78 = dma.done [#allocation6], 128
    $region33: #{tpu_custom_call.1} parent=1 // pred_fallthru
      _
    // Predicated region
    $region34: #{tpu_custom_call.1} parent=1 // pred_check
      _
    $region35: #{tpu_custom_call.1} parent=1 // pred_check_branch
      %80 = sbr.rel (0) target = $region37
    $region36: #{tpu_custom_call.1} parent=1 // pred_region
      %81 = dma.done [#allocation6], 768
    $region37: #{tpu_custom_call.1} parent=1 // pred_fallthru
      _
    // Predicated region
    $region38: #{tpu_custom_call.1} parent=1 // pred_check
      _
    $region39: #{tpu_custom_call.1} parent=1 // pred_check_branch
      %83 = sbr.rel (0) target = $region41
    $region40: #{tpu_custom_call.1} parent=1 // pred_region
      %84 = dma.done [#allocation9], 4096
    $region41: #{tpu_custom_call.1} parent=1 // pred_fallthru
      _
    // Predicated region
    $region42: #{tpu_custom_call.1} parent=1 // pred_check
      _
    $region43: #{tpu_custom_call.1} parent=1 // pred_check_branch
      %86 = sbr.rel (0) target = $region45
    $region44: #{tpu_custom_call.1} parent=1 // pred_region
      %87 = dma.done [#allocation9], 2048
    $region45: #{tpu_custom_call.1} parent=1 // pred_fallthru
      _
    %v88 = vld [vmem:[#allocation2] sm:$0xff]
    %v89 = vld [vmem:[#allocation5] sm:$0xff]
    %v90 = vld [vmem:[#allocation7] sm:$0xff]
    %v91 = vld [vmem:[#allocation7 + $0x8] sm:$0xff]
    %v92 = vld [vmem:[#allocation7 + $0x10] sm:$0xff]
    %v93 = vld [vmem:[#allocation7 + $0x18] sm:$0xff]
    %v94 = vld [vmem:[#allocation7 + $0x20] sm:$0xff]
    %v95 = vld [vmem:[#allocation7 + $0x28] sm:$0xff]
    %v96 = vld [vmem:[%s5] sm:$0x7]
    %v98 = vlaneseq
    %v99 = vshrl.u32 %v98, 7
    %v100 = vsub.s32 0, %v99
    %v101 = vrot.slane %v96, %v100
    %v102 = vlaneseq
    %v103 = vshrl.u32 %v102, 7
    %v104 = vsub.s32 1, %v103
    %v105 = vrot.slane %v96, %v104
    %v106 = vlaneseq
    %v107 = vshrl.u32 %v106, 7
    %v108 = vsub.s32 2, %v107
    %v109 = vrot.slane %v96, %v108
    %vm113 = vcmask 130048
    %v115 = vsel %vm113, %v88, 0
    %117 = vmatprep.subr.mxu0 0.0
    %118 = vmatpush1.msra.mxu0 0.0
    %119 = vmatprep.subr.mxu0 0.0
    %120 = vmatpush1.msra.mxu0 0.0
    %121 = vmatprep.subr.mxu0 0.0
    %122 = vmatpush1.msra.mxu0 0.0
    %123 = vmatprep.subr.mxu0 0.0
    %124 = vmatpush1.msra.mxu0 0.0
    %125 = vmatprep.subr.mxu0 0.0
    %126 = vmatpush1.msra.mxu0 0.0
    %127 = vmatprep.subr.mxu0 0.0
    %128 = vmatpush1.msra.mxu0 0.0
    %129 = vmatprep.subr.mxu0 0.0
    %130 = vmatpush1.msra.mxu0 0.0
    %131 = vmatprep.subr.mxu0 0.0
    %132 = vmatpush1.msra.mxu0 0.0
    %133 = vmatprep.subr.mxu0 0.0
    %134 = vmatpush1.msra.mxu0 0.0
    %135 = vmatprep.subr.mxu0 0.0
    %136 = vmatpush1.msra.mxu0 0.0
    %137 = vmatprep.subr.mxu0 0.0
    %138 = vmatpush1.msra.mxu0 0.0
    %139 = vmatprep.subr.mxu0 0.0
    %140 = vmatpush1.msra.mxu0 0.0
    %141 = vmatprep.subr.mxu0 0.0
    %142 = vmatpush1.msra.mxu0 0.0
    %143 = vmatprep.subr.mxu0 0.0
    %144 = vmatpush1.msra.mxu0 0.0
    %145 = vmatprep.subr.mxu0 %v94
    %146 = vmatpush1.msra.mxu0 %v93
    %147 = vmatprep.subr.mxu0 %v91
    %148 = vmatpush1.msra.mxu0 %v90
    %149 = vmatprep.subr.mxu0 0.0
    %150 = vmatpush2.msra.mxu0 0.0
    %151 = vmatprep.subr.mxu0 0.0
    %152 = vmatpush2.msra.mxu0 0.0
    %153 = vmatprep.subr.mxu0 0.0
    %154 = vmatpush2.msra.mxu0 0.0
    %155 = vmatprep.subr.mxu0 0.0
    %156 = vmatpush2.msra.mxu0 0.0
    %157 = vmatprep.subr.mxu0 0.0
    %158 = vmatpush2.msra.mxu0 0.0
    %159 = vmatprep.subr.mxu0 0.0
    %160 = vmatpush2.msra.mxu0 0.0
    %161 = vmatprep.subr.mxu0 0.0
    %162 = vmatpush2.msra.mxu0 0.0
    %163 = vmatprep.subr.mxu0 0.0
    %164 = vmatpush2.msra.mxu0 0.0
    %165 = vmatprep.subr.mxu0 0.0
    %166 = vmatpush2.msra.mxu0 0.0
    %167 = vmatprep.subr.mxu0 0.0
    %168 = vmatpush2.msra.mxu0 0.0
    %169 = vmatprep.subr.mxu0 0.0
    %170 = vmatpush2.msra.mxu0 0.0
    %171 = vmatprep.subr.mxu0 0.0
    %172 = vmatpush2.msra.mxu0 0.0
    %173 = vmatprep.subr.mxu0 0.0
    %174 = vmatpush2.msra.mxu0 0.0
    %175 = vmatprep.subr.mxu0 0.0
    %176 = vmatpush2.msra.mxu0 0.0
    %177 = vmatprep.subr.mxu0 0.0
    %178 = vmatpush2.msra.mxu0 0.0
    %179 = vmatprep.subr.mxu0 0.0
    %180 = vmatpush2.msra.mxu0 0.0
    %181 = vmatprep.mubr.f32.mxu0 0.0
    %182 = vmatmul.mubr.f32.gmra.mxu0 %v115
    %v183 = vpop.f32.mrf.mxu0
    %v184 = vadd.f32 %v101, %v183
    %v185 = vpop.f32.mrf.mxu0
    %v186 = vadd.f32 %v105, %v185
    %187 = vdwg.mxu0
    %188 = vmatprep.subr.mxu0 0.0
    %189 = vmatpush1.msra.mxu0 0.0
    %190 = vmatprep.subr.mxu0 0.0
    %191 = vmatpush1.msra.mxu0 0.0
    %192 = vmatprep.subr.mxu0 0.0
    %193 = vmatpush1.msra.mxu0 0.0
    %194 = vmatprep.subr.mxu0 0.0
    %195 = vmatpush1.msra.mxu0 0.0
    %196 = vmatprep.subr.mxu0 0.0
    %197 = vmatpush1.msra.mxu0 0.0
    %198 = vmatprep.subr.mxu0 0.0
    %199 = vmatpush1.msra.mxu0 0.0
    %200 = vmatprep.subr.mxu0 0.0
    %201 = vmatpush1.msra.mxu0 0.0
    %202 = vmatprep.subr.mxu0 0.0
    %203 = vmatpush1.msra.mxu0 0.0
    %204 = vmatprep.subr.mxu0 0.0
    %205 = vmatpush1.msra.mxu0 0.0
    %206 = vmatprep.subr.mxu0 0.0
    %207 = vmatpush1.msra.mxu0 0.0
    %208 = vmatprep.subr.mxu0 0.0
    %209 = vmatpush1.msra.mxu0 0.0
    %210 = vmatprep.subr.mxu0 0.0
    %211 = vmatpush1.msra.mxu0 0.0
    %212 = vmatprep.subr.mxu0 0.0
    %213 = vmatpush1.msra.mxu0 0.0
    %214 = vmatprep.subr.mxu0 0.0
    %215 = vmatpush1.msra.mxu0 0.0
    %216 = vmatprep.subr.mxu0 0.0
    %217 = vmatpush1.msra.mxu0 %v95
    %218 = vmatprep.subr.mxu0 0.0
    %219 = vmatpush1.msra.mxu0 %v92
    %220 = vmatprep.subr.mxu0 0.0
    %221 = vmatpush2.msra.mxu0 0.0
    %222 = vmatprep.subr.mxu0 0.0
    %223 = vmatpush2.msra.mxu0 0.0
    %224 = vmatprep.subr.mxu0 0.0
    %225 = vmatpush2.msra.mxu0 0.0
    %226 = vmatprep.subr.mxu0 0.0
    %227 = vmatpush2.msra.mxu0 0.0
    %228 = vmatprep.subr.mxu0 0.0
    %229 = vmatpush2.msra.mxu0 0.0
    %230 = vmatprep.subr.mxu0 0.0
    %231 = vmatpush2.msra.mxu0 0.0
    %232 = vmatprep.subr.mxu0 0.0
    %233 = vmatpush2.msra.mxu0 0.0
    %234 = vmatprep.subr.mxu0 0.0
    %235 = vmatpush2.msra.mxu0 0.0
    %236 = vmatprep.subr.mxu0 0.0
    %237 = vmatpush2.msra.mxu0 0.0
    %238 = vmatprep.subr.mxu0 0.0
    %239 = vmatpush2.msra.mxu0 0.0
    %240 = vmatprep.subr.mxu0 0.0
    %241 = vmatpush2.msra.mxu0 0.0
    %242 = vmatprep.subr.mxu0 0.0
    %243 = vmatpush2.msra.mxu0 0.0
    %244 = vmatprep.subr.mxu0 0.0
    %245 = vmatpush2.msra.mxu0 0.0
    %246 = vmatprep.subr.mxu0 0.0
    %247 = vmatpush2.msra.mxu0 0.0
    %248 = vmatprep.subr.mxu0 0.0
    %249 = vmatpush2.msra.mxu0 0.0
    %250 = vmatprep.subr.mxu0 0.0
    %251 = vmatpush2.msra.mxu0 0.0
    %252 = vmatprep.mubr.f32.mxu0 0.0
    %253 = vmatmul.mubr.f32.gmra.mxu0 %v115
    %v254 = vpop.f32.mrf.mxu0
    %v255 = vadd.f32 %v109, %v254
    %v256 = vpop.f32.mrf.mxu0
    %257 = vdwg.mxu0
    %v258 = vld [vmem:[#allocation8] sm:$0xff]
    %v259 = vld [vmem:[#allocation8 + $0x8] sm:$0xff]
    %v260 = vld [vmem:[#allocation8 + $0x10] sm:$0xff]
    %v261 = vld [vmem:[#allocation8 + $0x18] sm:$0xff]
    %v262 = vld [vmem:[#allocation8 + $0x20] sm:$0xff]
    %v263 = vld [vmem:[#allocation8 + $0x28] sm:$0xff]
    %v264 = vld [vmem:[#allocation8 + $0x30] sm:$0xff]
    %v265 = vld [vmem:[#allocation8 + $0x38] sm:$0xff]
    %v266 = vld [vmem:[#allocation8 + $0x40] sm:$0xff]
    %v267 = vld [vmem:[#allocation8 + $0x48] sm:$0xff]
    %v268 = vld [vmem:[#allocation8 + $0x50] sm:$0xff]
    %v269 = vld [vmem:[#allocation8 + $0x58] sm:$0xff]
    %v270 = vld [vmem:[#allocation8 + $0x60] sm:$0xff]
    %v271 = vld [vmem:[#allocation8 + $0x68] sm:$0xff]
    %v272 = vld [vmem:[#allocation8 + $0x70] sm:$0xff]
    %v273 = vld [vmem:[#allocation8 + $0x78] sm:$0xff]
    %v274 = vld [vmem:[#allocation8 + $0x80] sm:$0xff]
    %v275 = vld [vmem:[#allocation8 + $0x88] sm:$0xff]
    %v276 = vld [vmem:[#allocation8 + $0x90] sm:$0xff]
    %v277 = vld [vmem:[#allocation8 + $0x98] sm:$0xff]
    %v278 = vld [vmem:[#allocation8 + $0xa0] sm:$0xff]
    %v279 = vld [vmem:[#allocation8 + $0xa8] sm:$0xff]
    %v280 = vld [vmem:[#allocation8 + $0xb0] sm:$0xff]
    %v281 = vld [vmem:[#allocation8 + $0xb8] sm:$0xff]
    %v282 = vld [vmem:[#allocation8 + $0xc0] sm:$0xff]
    %v283 = vld [vmem:[#allocation8 + $0xc8] sm:$0xff]
    %v284 = vld [vmem:[#allocation8 + $0xd0] sm:$0xff]
    %v285 = vld [vmem:[#allocation8 + $0xd8] sm:$0xff]
    %v286 = vld [vmem:[#allocation8 + $0xe0] sm:$0xff]
    %v287 = vld [vmem:[#allocation8 + $0xe8] sm:$0xff]
    %v288 = vld [vmem:[#allocation8 + $0xf0] sm:$0xff]
    %v289 = vld [vmem:[#allocation8 + $0xf8] sm:$0xff]
    %290 = vmatprep.subr.mxu0 %v289
    %291 = vmatpush1.msra.mxu0 %v288
    %292 = vmatprep.subr.mxu0 %v287
    %293 = vmatpush1.msra.mxu0 %v286
    %294 = vmatprep.subr.mxu0 %v285
    %295 = vmatpush1.msra.mxu0 %v284
    %296 = vmatprep.subr.mxu0 %v283
    %297 = vmatpush1.msra.mxu0 %v282
    %298 = vmatprep.subr.mxu0 %v281
    %299 = vmatpush1.msra.mxu0 %v280
    %300 = vmatprep.subr.mxu0 %v279
    %301 = vmatpush1.msra.mxu0 %v278
    %302 = vmatprep.subr.mxu0 %v277
    %303 = vmatpush1.msra.mxu0 %v276
    %304 = vmatprep.subr.mxu0 %v275
    %305 = vmatpush1.msra.mxu0 %v274
    %306 = vmatprep.subr.mxu0 %v273
    %307 = vmatpush1.msra.mxu0 %v272
    %308 = vmatprep.subr.mxu0 %v271
    %309 = vmatpush1.msra.mxu0 %v270
    %310 = vmatprep.subr.mxu0 %v269
    %311 = vmatpush1.msra.mxu0 %v268
    %312 = vmatprep.subr.mxu0 %v267
    %313 = vmatpush1.msra.mxu0 %v266
    %314 = vmatprep.subr.mxu0 %v265
    %315 = vmatpush1.msra.mxu0 %v264
    %316 = vmatprep.subr.mxu0 %v263
    %317 = vmatpush1.msra.mxu0 %v262
    %318 = vmatprep.subr.mxu0 %v261
    %319 = vmatpush1.msra.mxu0 %v260
    %320 = vmatprep.subr.mxu0 %v259
    %321 = vmatpush1.msra.mxu0 %v258
    %322 = vmatprep.subr.mxu0 0.0
    %323 = vmatpush2.msra.mxu0 0.0
    %324 = vmatprep.subr.mxu0 0.0
    %325 = vmatpush2.msra.mxu0 0.0
    %326 = vmatprep.subr.mxu0 0.0
    %327 = vmatpush2.msra.mxu0 0.0
    %328 = vmatprep.subr.mxu0 0.0
    %329 = vmatpush2.msra.mxu0 0.0
    %330 = vmatprep.subr.mxu0 0.0
    %331 = vmatpush2.msra.mxu0 0.0
    %332 = vmatprep.subr.mxu0 0.0
    %333 = vmatpush2.msra.mxu0 0.0
    %334 = vmatprep.subr.mxu0 0.0
    %335 = vmatpush2.msra.mxu0 0.0
    %336 = vmatprep.subr.mxu0 0.0
    %337 = vmatpush2.msra.mxu0 0.0
    %338 = vmatprep.subr.mxu0 0.0
    %339 = vmatpush2.msra.mxu0 0.0
    %340 = vmatprep.subr.mxu0 0.0
    %341 = vmatpush2.msra.mxu0 0.0
    %342 = vmatprep.subr.mxu0 0.0
    %343 = vmatpush2.msra.mxu0 0.0
    %344 = vmatprep.subr.mxu0 0.0
    %345 = vmatpush2.msra.mxu0 0.0
    %346 = vmatprep.subr.mxu0 0.0
    %347 = vmatpush2.msra.mxu0 0.0
    %348 = vmatprep.subr.mxu0 0.0
    %349 = vmatpush2.msra.mxu0 0.0
    %350 = vmatprep.subr.mxu0 0.0
    %351 = vmatpush2.msra.mxu0 0.0
    %352 = vmatprep.subr.mxu0 0.0
    %353 = vmatpush2.msra.mxu0 0.0
    %354 = vmatprep.mubr.f32.mxu0 0.0
    %355 = vmatmul.mubr.f32.gmra.mxu0 %v89
    %v356 = vpop.f32.mrf.mxu0
    %v357 = vadd.f32 0.0, %v356
    %v358 = vpop.f32.mrf.mxu0
    %v359 = vadd.f32 0.0, %v358
    %360 = vdwg.mxu0
    %v361 = vadd.f32 %v184, %v357
    %v362 = vadd.f32 %v186, %v359
    %v363 = vxor.u32 %v361, 2147483648
    %v364 = vxor.u32 %v362, 2147483648
    %v365 = vmul.f32 %v363, 1.442695
    %v366 = vpow.pop %v365
    %v367 = vmul.f32 %v364, 1.442695
    %v368 = vpow.pop %v367
    %v369 = vadd.f32 %v366, 1.0
    %v370 = vadd.f32 %v368, 1.0
    %v371 = vrcp.pop %v369
    %v372 = vmul.f32 1.0, %v371
    %v373 = vrcp.pop %v370
    %v374 = vmul.f32 1.0, %v373
    %v375 = vmul.f32 %v89, %v372
    %v376 = vld [vmem:[#allocation10] sm:$0xff]
    %v377 = vld [vmem:[#allocation10 + $0x8] sm:$0xff]
    %v378 = vld [vmem:[#allocation10 + $0x10] sm:$0xff]
    %v379 = vld [vmem:[#allocation10 + $0x18] sm:$0xff]
    %v380 = vld [vmem:[#allocation10 + $0x20] sm:$0xff]
    %v381 = vld [vmem:[#allocation10 + $0x28] sm:$0xff]
    %v382 = vld [vmem:[#allocation10 + $0x30] sm:$0xff]
    %v383 = vld [vmem:[#allocation10 + $0x38] sm:$0xff]
    %v384 = vld [vmem:[#allocation10 + $0x40] sm:$0xff]
    %v385 = vld [vmem:[#allocation10 + $0x48] sm:$0xff]
    %v386 = vld [vmem:[#allocation10 + $0x50] sm:$0xff]
    %v387 = vld [vmem:[#allocation10 + $0x58] sm:$0xff]
    %v388 = vld [vmem:[#allocation10 + $0x60] sm:$0xff]
    %v389 = vld [vmem:[#allocation10 + $0x68] sm:$0xff]
    %v390 = vld [vmem:[#allocation10 + $0x70] sm:$0xff]
    %v391 = vld [vmem:[#allocation10 + $0x78] sm:$0xff]
    %392 = vmatprep.subr.mxu0 0.0
    %393 = vmatpush1.msra.mxu0 %v391
    %394 = vmatprep.subr.mxu0 0.0
    %395 = vmatpush1.msra.mxu0 %v390
    %396 = vmatprep.subr.mxu0 0.0
    %397 = vmatpush1.msra.mxu0 %v389
    %398 = vmatprep.subr.mxu0 0.0
    %399 = vmatpush1.msra.mxu0 %v388
    %400 = vmatprep.subr.mxu0 0.0
    %401 = vmatpush1.msra.mxu0 %v387
    %402 = vmatprep.subr.mxu0 0.0
    %403 = vmatpush1.msra.mxu0 %v386
    %404 = vmatprep.subr.mxu0 0.0
    %405 = vmatpush1.msra.mxu0 %v385
    %406 = vmatprep.subr.mxu0 0.0
    %407 = vmatpush1.msra.mxu0 %v384
    %408 = vmatprep.subr.mxu0 0.0
    %409 = vmatpush1.msra.mxu0 %v383
    %410 = vmatprep.subr.mxu0 0.0
    %411 = vmatpush1.msra.mxu0 %v382
    %412 = vmatprep.subr.mxu0 0.0
    %413 = vmatpush1.msra.mxu0 %v381
    %414 = vmatprep.subr.mxu0 0.0
    %415 = vmatpush1.msra.mxu0 %v380
    %416 = vmatprep.subr.mxu0 0.0
    %417 = vmatpush1.msra.mxu0 %v379
    %418 = vmatprep.subr.mxu0 0.0
    %419 = vmatpush1.msra.mxu0 %v378
    %420 = vmatprep.subr.mxu0 0.0
    %421 = vmatpush1.msra.mxu0 %v377
    %422 = vmatprep.subr.mxu0 0.0
    %423 = vmatpush1.msra.mxu0 %v376
    %424 = vmatprep.subr.mxu0 0.0
    %425 = vmatpush2.msra.mxu0 0.0
    %426 = vmatprep.subr.mxu0 0.0
    %427 = vmatpush2.msra.mxu0 0.0
    %428 = vmatprep.subr.mxu0 0.0
    %429 = vmatpush2.msra.mxu0 0.0
    %430 = vmatprep.subr.mxu0 0.0
    %431 = vmatpush2.msra.mxu0 0.0
    %432 = vmatprep.subr.mxu0 0.0
    %433 = vmatpush2.msra.mxu0 0.0
    %434 = vmatprep.subr.mxu0 0.0
    %435 = vmatpush2.msra.mxu0 0.0
    %436 = vmatprep.subr.mxu0 0.0
    %437 = vmatpush2.msra.mxu0 0.0
    %438 = vmatprep.subr.mxu0 0.0
    %439 = vmatpush2.msra.mxu0 0.0
    %440 = vmatprep.subr.mxu0 0.0
    %441 = vmatpush2.msra.mxu0 0.0
    %442 = vmatprep.subr.mxu0 0.0
    %443 = vmatpush2.msra.mxu0 0.0
    %444 = vmatprep.subr.mxu0 0.0
    %445 = vmatpush2.msra.mxu0 0.0
    %446 = vmatprep.subr.mxu0 0.0
    %447 = vmatpush2.msra.mxu0 0.0
    %448 = vmatprep.subr.mxu0 0.0
    %449 = vmatpush2.msra.mxu0 0.0
    %450 = vmatprep.subr.mxu0 0.0
    %451 = vmatpush2.msra.mxu0 0.0
    %452 = vmatprep.subr.mxu0 0.0
    %453 = vmatpush2.msra.mxu0 0.0
    %454 = vmatprep.subr.mxu0 0.0
    %455 = vmatpush2.msra.mxu0 0.0
    %456 = vmatprep.mubr.f32.mxu0 0.0
    %457 = vmatmul.mubr.f32.gmra.mxu0 %v375
    %v458 = vpop.f32.mrf.mxu0
    %v459 = vadd.f32 0.0, %v458
    %v460 = vpop.f32.mrf.mxu0
    %461 = vdwg.mxu0
    %v462 = vadd.f32 %v255, %v459
    %v463 = vmax.f32 %v462, 0.0
    %v464 = vsub.f32 %v89, %v463
    %v465 = vmul.f32 %v374, %v464
    %v466 = vadd.f32 %v463, %v465
    %vm467 = vcmask 261120
    %468 = vst.msk [vmem:[#allocation11] sm:$0xff] %vm467, %v466
    // Predicated region
    $region46: #{tpu_custom_call.1} parent=1 // pred_check
      _
    $region47: #{tpu_custom_call.1} parent=1 // pred_check_branch
      %470 = sbr.rel (0) target = $region49
    $region48: #{tpu_custom_call.1} parent=1 // pred_region
      %s472 = ssub.s32 128, 128
      %473 = vsyncadd [#allocation4], %s472
      %s475 = sshll.u32 [#allocation11], 4
      %s476 = int_to_ptr.vmem [resolvable:$true] %s475
      %478 = dma.vmem_to_hbm [thread:$0]  %s476, 128, %s6, [#allocation4]
    $region49: #{tpu_custom_call.1} parent=1 // pred_fallthru
      _
    // Predicated region
    $region50: #{tpu_custom_call.1} parent=1 // pred_check
      _
    $region51: #{tpu_custom_call.1} parent=1 // pred_check_branch
      %480 = sbr.rel (0) target = $region53
    $region52: #{tpu_custom_call.1} parent=1 // pred_region
      %481 = dma.done [#allocation4], 128
    $region53: #{tpu_custom_call.1} parent=1 // pred_fallthru
      _
    %482 = vsyncpa [#allocation3], 1
    %483 = vsyncpa [#allocation6], 1
    %484 = vsyncpa [#allocation9], 1
    %485 = vsyncpa [#allocation4], 1

</llo_original>
